<compile_context>
chip_gen: v5e
topology: v5e:2x2
jax: 0.10.0
libtpu: 0.0.40
codegen_flags: <defaults>
</compile_context>

<pallas_src>
import functools

import jax
import jax.numpy as jnp
from jax.experimental import pallas as pl
from jax.experimental.pallas import tpu as pltpu

BN_EPS = 1e-5
LEAKY_SLOPE = 0.01            # pytorch_toolbelt ABN default activation: leaky_relu(0.01)
LANE = 128
VMEM_LIMIT = 40 * 1024 * 1024           # > v5e's 16 MiB scoped default, << v7x's 64 MiB
RESIDENT_KV_BUDGET = 8 * 1024 * 1024    # double-buffered bf16 K+V budget for resident path


def _round_up(n, m):
    return ((n + m - 1) // m) * m


def _pick_tile(total, target):
    """Largest multiple of 128 that divides `total` (itself a multiple of 128) and
    is <= target."""
    t = max(LANE, (min(target, total) // LANE) * LANE)
    while total % t:
        t -= LANE
    return t


# ---------------------------------------------------------------------------
# Kernel 1: projection pre-pass  (K == Q shared weights, V)
# ---------------------------------------------------------------------------
def _projection_kernel(x_ref, wk_ref, bk_ref, wv_ref, bv_ref, kq_ref, v_ref):
    x = x_ref[...]                                                   # (TS, Cin_p) bf16
    # f_key / f_query (shared): 1x1 conv with BN(eval) + key_channels**-0.25 folded in.
    kq = jnp.dot(x, wk_ref[...], preferred_element_type=jnp.float32) + bk_ref[...]
    kq = jnp.where(kq >= 0, kq, LEAKY_SLOPE * kq)                    # leaky_relu in f32
    kq_ref[...] = kq.astype(kq_ref.dtype)                            # bf16 for the MXU
    # f_value: 1x1 conv with bias.
    v = jnp.dot(x, wv_ref[...], preferred_element_type=jnp.float32) + bv_ref[...]
    v_ref[...] = v.astype(v_ref.dtype)


# ---------------------------------------------------------------------------
# Kernel 2: flash-style online-softmax attention + final 1x1 conv W
# ---------------------------------------------------------------------------
def _online_softmax_step(s, v_bf16, m_sc, l_sc, acc_sc):
    m_prev = m_sc[...]
    m_new = jnp.maximum(m_prev, jnp.max(s, axis=-1, keepdims=True))
    alpha = jnp.exp(m_prev - m_new)
    p = jnp.exp(s - m_new)
    l_sc[...] = alpha * l_sc[...] + jnp.sum(p, axis=-1, keepdims=True)
    acc_sc[...] = alpha * acc_sc[...] + jnp.dot(
        p.astype(jnp.bfloat16), v_bf16, preferred_element_type=jnp.float32)
    m_sc[...] = m_new


def _finalize(acc_sc, l_sc, ww_ref, bw_ref, o_ref):
    # One O(TQ*Cv) normalization (EUP approx reciprocal), then the final 1x1 conv W.
    # Output last dim is 128-padded (lane-dense) and stored in bf16.
    ctx = (acc_sc[...] * pl.reciprocal(l_sc[...], approx=True)).astype(jnp.bfloat16)
    out = jnp.dot(ctx, ww_ref[...], preferred_element_type=jnp.float32) + bw_ref[...]
    o_ref[...] = out.astype(o_ref.dtype)


def _flash_resident_kernel(q_ref, k_ref, v_ref, ww_ref, bw_ref, o_ref,
                           m_sc, l_sc, acc_sc, *, tk, num_kv, hw, hw_pad):
    """K/V for the whole (padded) image are VMEM-resident; loop over kv chunks."""
    m_sc[...] = jnp.full_like(m_sc, -jnp.inf)
    l_sc[...] = jnp.zeros_like(l_sc)
    acc_sc[...] = jnp.zeros_like(acc_sc)
    q = q_ref[...]                                                   # (TQ, Ck_p) bf16

    @pl.loop(0, num_kv)
    def _(i):
        start = pl.multiple_of(i * tk, LANE)
        k = k_ref[pl.ds(start, tk), :]
        v = v_ref[pl.ds(start, tk), :]
        # s = q @ k^T contracting the last (key-channel) dims: no explicit transpose.
        s = jax.lax.dot_general(q, k, (((1,), (1,)), ((), ())),
                                preferred_element_type=jnp.float32)  # (TQ, TK) f32
        if hw_pad != hw:  # mask padded key columns (trace-time conditional)
            col = jax.lax.broadcasted_iota(jnp.int32, (1, tk), 1) + start
            s = jnp.where(col < hw, s, -jnp.inf)
        _online_softmax_step(s, v, m_sc, l_sc, acc_sc)

    _finalize(acc_sc, l_sc, ww_ref, bw_ref, o_ref)


def _flash_tiled_kernel(q_ref, k_ref, v_ref, ww_ref, bw_ref, o_ref,
                        m_sc, l_sc, acc_sc, *, tk, hw, hw_pad):
    """Large-feature-map path: kv reduction is the last ('arbitrary') grid axis."""
    ki = pl.program_id(2)

    @pl.when(ki == 0)
    def _():
        m_sc[...] = jnp.full_like(m_sc, -jnp.inf)
        l_sc[...] = jnp.zeros_like(l_sc)
        acc_sc[...] = jnp.zeros_like(acc_sc)

    s = jax.lax.dot_general(q_ref[...], k_ref[...], (((1,), (1,)), ((), ())),
                            preferred_element_type=jnp.float32)      # (TQ, TK) f32
    if hw_pad != hw:
        col = jax.lax.broadcasted_iota(jnp.int32, (1, tk), 1) + ki * tk
        s = jnp.where(col < hw, s, -jnp.inf)
    _online_softmax_step(s, v_ref[...], m_sc, l_sc, acc_sc)

    @pl.when(ki == pl.num_programs(2) - 1)
    def _():
        _finalize(acc_sc, l_sc, ww_ref, bw_ref, o_ref)


# ---------------------------------------------------------------------------
# Wrapper
# ---------------------------------------------------------------------------
def self_attention_block(x_nchw, params, key_channels, value_channels, out_channels,
                         *, tq=256, tk=512, proj_tile=1024, force_kv_grid=False):
    """x_nchw: (N, Cin, H, W) float32.  Returns (N, Cout, H, W) float32."""
    N, Cin, H, W = x_nchw.shape
    HW = H * W

    cin_p = _round_up(Cin, LANE)
    ck_p = _round_up(key_channels, LANE)
    cv_p = _round_up(value_channels, LANE)
    co_p = _round_up(out_channels, LANE)

    # Pad HW to a tile multiple; padded key columns are -inf masked in the kernel,
    # padded query rows are discarded on the host.  Every kv chunk keeps >=1 valid
    # column, so the online-softmax max stays finite.
    align = 512 if HW >= 512 else LANE
    hw_pad = _round_up(HW, align)
    tq = _pick_tile(hw_pad, tq)
    tk = _pick_tile(hw_pad, tk)
    ts = _pick_tile(hw_pad, proj_tile)

    # ---- host-side folding (exact in real arithmetic) ----
    # BN(eval): y = (z - mu) * gamma / sqrt(var+eps) + beta  -> fold into conv.
    # key_channels**-0.5 on sim == **-0.25 on both query and key (shared weights);
    # leaky_relu(a*z) = a*leaky_relu(z) for a > 0, so fold straight into weight/bias.
    inv_std = jax.lax.rsqrt(params["bn_var"] + BN_EPS)               # (1, Ck)
    g = params["bn_gamma"] * inv_std
    s_half = float(key_channels) ** -0.25
    wk_f = params["wk"] * (g * s_half)                               # (Cin, Ck)
    bk_f = ((params["bk"] - params["bn_mean"]) * g + params["bn_beta"]) * s_half

    def pad2(a, r, c):
        return jnp.pad(a, ((0, r - a.shape[0]), (0, c - a.shape[1])))

    wk_p = pad2(wk_f, cin_p, ck_p).astype(jnp.bfloat16)
    bk_p = pad2(bk_f, 1, ck_p).astype(jnp.float32)
    wv_p = pad2(params["wv"], cin_p, cv_p).astype(jnp.bfloat16)
    bv_p = pad2(params["bv"], 1, cv_p).astype(jnp.float32)
    ww_p = pad2(params["ww"], cv_p, co_p).astype(jnp.bfloat16)
    bw_p = pad2(params["bw"], 1, co_p).astype(jnp.float32)

    # NCHW -> (N, HW_pad, Cin_p) bf16 once (halves HBM traffic into kernel 1).
    x = jnp.transpose(x_nchw, (0, 2, 3, 1)).reshape(N, HW, Cin)
    x = jnp.pad(x, ((0, 0), (0, hw_pad - HW), (0, cin_p - Cin))).astype(jnp.bfloat16)

    # ---- kernel 1: K/V projections once for the whole image ----
    proj_spec = pltpu.PrefetchScalarGridSpec(
        num_scalar_prefetch=0,
        grid=(N, hw_pad // ts),
        in_specs=[
            pl.BlockSpec((None, ts, cin_p), lambda b, si: (b, si, 0)),
            pl.BlockSpec((cin_p, ck_p), lambda b, si: (0, 0)),
            pl.BlockSpec((1, ck_p), lambda b, si: (0, 0)),
            pl.BlockSpec((cin_p, cv_p), lambda b, si: (0, 0)),
            pl.BlockSpec((1, cv_p), lambda b, si: (0, 0)),
        ],
        out_specs=[
            pl.BlockSpec((None, ts, ck_p), lambda b, si: (b, si, 0)),
            pl.BlockSpec((None, ts, cv_p), lambda b, si: (b, si, 0)),
        ],
    )
    kq, v = pl.pallas_call(
        _projection_kernel,
        out_shape=(jax.ShapeDtypeStruct((N, hw_pad, ck_p), jnp.bfloat16),
                   jax.ShapeDtypeStruct((N, hw_pad, cv_p), jnp.bfloat16)),
        grid_spec=proj_spec,
        compiler_params=pltpu.CompilerParams(
            dimension_semantics=("parallel", "parallel"),
            vmem_limit_bytes=VMEM_LIMIT),
    )(x, wk_p, bk_p, wv_p, bv_p)

    # ---- kernel 2: flash attention (HW x HW never materialized) + conv W ----
    kv_resident_bytes = 2 * hw_pad * (ck_p + cv_p) * 2   # double-buffered bf16 K + V
    use_resident = (not force_kv_grid) and kv_resident_bytes <= RESIDENT_KV_BUDGET

    scratch_shapes = [
        pltpu.VMEM((tq, 1), jnp.float32),      # running max  m
        pltpu.VMEM((tq, 1), jnp.float32),      # running sum  l
        pltpu.VMEM((tq, cv_p), jnp.float32),   # un-normalized context accumulator
    ]
    out_shape = jax.ShapeDtypeStruct((N, hw_pad, co_p), jnp.bfloat16)

    if use_resident:
        kernel = functools.partial(_flash_resident_kernel, tk=tk,
                                   num_kv=hw_pad // tk, hw=HW, hw_pad=hw_pad)
        flash_spec = pltpu.PrefetchScalarGridSpec(
            num_scalar_prefetch=0,
            grid=(N, hw_pad // tq),
            in_specs=[
                pl.BlockSpec((None, tq, ck_p), lambda b, qi: (b, qi, 0)),      # Q tile
                pl.BlockSpec((None, hw_pad, ck_p), lambda b, qi: (b, 0, 0)),   # K resident
                pl.BlockSpec((None, hw_pad, cv_p), lambda b, qi: (b, 0, 0)),   # V resident
                pl.BlockSpec((cv_p, co_p), lambda b, qi: (0, 0)),              # W weight
                pl.BlockSpec((1, co_p), lambda b, qi: (0, 0)),                 # W bias
            ],
            out_specs=pl.BlockSpec((None, tq, co_p), lambda b, qi: (b, qi, 0)),
            scratch_shapes=scratch_shapes,
        )
        dims = ("parallel", "parallel")
    else:
        kernel = functools.partial(_flash_tiled_kernel, tk=tk, hw=HW, hw_pad=hw_pad)
        flash_spec = pltpu.PrefetchScalarGridSpec(
            num_scalar_prefetch=0,
            grid=(N, hw_pad // tq, hw_pad // tk),
            in_specs=[
                pl.BlockSpec((None, tq, ck_p), lambda b, qi, ki: (b, qi, 0)),
                pl.BlockSpec((None, tk, ck_p), lambda b, qi, ki: (b, ki, 0)),
                pl.BlockSpec((None, tk, cv_p), lambda b, qi, ki: (b, ki, 0)),
                pl.BlockSpec((cv_p, co_p), lambda b, qi, ki: (0, 0)),
                pl.BlockSpec((1, co_p), lambda b, qi, ki: (0, 0)),
            ],
            out_specs=pl.BlockSpec((None, tq, co_p), lambda b, qi, ki: (b, qi, 0)),
            scratch_shapes=scratch_shapes,
        )
        dims = ("parallel", "parallel", "arbitrary")

    out = pl.pallas_call(
        kernel,
        out_shape=out_shape,
        grid_spec=flash_spec,
        compiler_params=pltpu.CompilerParams(
            dimension_semantics=dims,
            vmem_limit_bytes=VMEM_LIMIT),
    )(kq, kq, v, ww_p, bw_p)

    # ---- (N, HW_pad, Cout_pad) bf16 -> NCHW f32 ----
    out = out[:, :HW, :out_channels].astype(jnp.float32)
    return jnp.transpose(out.reshape(N, H, W, out_channels), (0, 3, 1, 2))


# ---------------------------------------------------------------------------
# Params / pure-JAX reference / demo
# ---------------------------------------------------------------------------
def init_params(key, in_channels, key_channels, value_channels, out_channels):
    ks = jax.random.split(key, 6)
    return {
        # f_key conv weight stored as (Cin, Ck)  (torch (Ck, Cin, 1, 1) transposed)
        "wk": jax.random.normal(ks[0], (in_channels, key_channels), jnp.float32) * 0.1,
        "bk": jax.random.normal(ks[1], (1, key_channels), jnp.float32) * 0.1,
        # ABN (BatchNorm eval) params
        "bn_gamma": jnp.ones((1, key_channels), jnp.float32),
        "bn_beta": jnp.zeros((1, key_channels), jnp.float32),
        "bn_mean": jnp.zeros((1, key_channels), jnp.float32),
        "bn_var": jnp.ones((1, key_channels), jnp.float32),
        # f_value conv
        "wv": jax.random.normal(ks[2], (in_channels, value_channels), jnp.float32) * 0.1,
        "bv": jax.random.normal(ks[3], (1, value_channels), jnp.float32) * 0.1,
        # W conv (bias initialized to 0, as in nn.init.constant_(self.W.bias, 0))
        "ww": jax.random.normal(ks[4], (value_channels, out_channels), jnp.float32) * 0.1,
        "bw": jnp.zeros((1, out_channels), jnp.float32),
    }


def _reference(x_nchw, params, key_channels):
    """Pure-JAX f32 reference of the PyTorch forward (scale == 1)."""
    N, Cin, H, W = x_nchw.shape
    x = jnp.transpose(x_nchw, (0, 2, 3, 1)).reshape(N, H * W, Cin)
    kq = x @ params["wk"] + params["bk"]
    inv_std = jax.lax.rsqrt(params["bn_var"] + BN_EPS)
    kq = (kq - params["bn_mean"]) * inv_std * params["bn_gamma"] + params["bn_beta"]
    kq = jnp.where(kq >= 0, kq, LEAKY_SLOPE * kq)
    v = x @ params["wv"] + params["bv"]
    sim = jnp.einsum("bqc,bkc->bqk", kq, kq) * float(key_channels) ** -0.5
    p = jax.nn.softmax(sim, axis=-1)
    ctx = jnp.einsum("bqk,bkc->bqc", p, v)
    out = ctx @ params["ww"] + params["bw"]
    return jnp.transpose(out.reshape(N, H, W, -1), (0, 3, 1, 2))


if __name__ == "__main__":
    # Small shapes consistent with the module (scale=1).
    N, Cin, H, W = 2, 4, 16, 16            # HW = 256
    key_channels, value_channels = 8, 8
    out_channels = Cin                      # out_channels=None -> in_channels

    root = jax.random.PRNGKey(0)
    kx, kp = jax.random.split(root)
    x = jax.random.normal(kx, (N, Cin, H, W), jnp.float32)
    params = init_params(kp, Cin, key_channels, value_channels, out_channels)
    ref = _reference(x, params, key_channels)

    # 1) default path: K/V VMEM-resident, in-kernel kv loop.
    out = self_attention_block(x, params, key_channels, value_channels, out_channels)
    out = jax.block_until_ready(out)
    assert out.shape == (N, out_channels, H, W), out.shape
    err = float(jnp.max(jnp.abs(out - ref)))
    assert err < 3e-2, f"resident path max abs err vs reference: {err}"

    # 2) large-feature-map (kv grid axis) path, forced on the same small input.
    out2 = self_attention_block(x, params, key_channels, value_channels, out_channels,
                                tq=128, tk=128, force_kv_grid=True)
    out2 = jax.block_until_ready(out2)
    err2 = float(jnp.max(jnp.abs(out2 - ref)))
    assert err2 < 3e-2, f"kv-grid path max abs err vs reference: {err2}"

    # 3) spatial size not a multiple of 128 exercises HW padding + key masking.
    H3 = W3 = 10                            # HW = 100 -> padded to 128, 28 masked keys
    x3 = jax.random.normal(kx, (N, Cin, H3, W3), jnp.float32)
    out3 = self_attention_block(x3, params, key_channels, value_channels, out_channels)
    out3 = jax.block_until_ready(out3)
    ref3 = _reference(x3, params, key_channels)
    err3 = float(jnp.max(jnp.abs(out3 - ref3)))
    assert err3 < 3e-2, f"padded/masked path max abs err vs reference: {err3}"

    print("KERNEL_OK")
</pallas_src>

<mosaic_0001>
module attributes {stable_mosaic.version = 11 : i64} {
  func.func @_projection_kernel(%arg0: i32, %arg1: i32, %arg2: memref<1x256x128xbf16, #tpu.memory_space<vmem>>, %arg3: memref<128x128xbf16, #tpu.memory_space<vmem>>, %arg4: memref<1x128xf32, #tpu.memory_space<vmem>>, %arg5: memref<128x128xbf16, #tpu.memory_space<vmem>>, %arg6: memref<1x128xf32, #tpu.memory_space<vmem>>, %arg7: memref<1x256x128xbf16, #tpu.memory_space<vmem>>, %arg8: memref<1x256x128xbf16, #tpu.memory_space<vmem>>) attributes {dimension_semantics = [#tpu.dimension_semantics<parallel>, #tpu.dimension_semantics<parallel>], iteration_bounds = array<i64: 2, 1>, scalar_prefetch = 0 : i64, scratch_operands = 0 : i64, tpu.core_type = #tpu.core_type<tc>, window_params = [{transform_indices = @transform_0, window_bounds = array<i64: 1, 256, 128>}, {pipeline_mode = #tpu.pipeline_mode<synchronous>, transform_indices = @transform_1, window_bounds = array<i64: 128, 128>}, {pipeline_mode = #tpu.pipeline_mode<synchronous>, transform_indices = @transform_2, window_bounds = array<i64: 1, 128>}, {pipeline_mode = #tpu.pipeline_mode<synchronous>, transform_indices = @transform_3, window_bounds = array<i64: 128, 128>}, {pipeline_mode = #tpu.pipeline_mode<synchronous>, transform_indices = @transform_4, window_bounds = array<i64: 1, 128>}, {transform_indices = @transform_5, window_bounds = array<i64: 1, 256, 128>}, {transform_indices = @transform_6, window_bounds = array<i64: 1, 256, 128>}]} {
    %c0 = arith.constant 0 : index
    %c0_0 = arith.constant 0 : index
    %c0_1 = arith.constant 0 : index
    %0 = vector.load %arg2[%c0, %c0_0, %c0_1] : memref<1x256x128xbf16, #tpu.memory_space<vmem>>, vector<1x256x128xbf16>
    %1 = vector.shape_cast %0 : vector<1x256x128xbf16> to vector<256x128xbf16>
    %c0_2 = arith.constant 0 : index
    %c0_3 = arith.constant 0 : index
    %2 = vector.load %arg3[%c0_2, %c0_3] : memref<128x128xbf16, #tpu.memory_space<vmem>>, vector<128x128xbf16>
    %cst = arith.constant dense<0.000000e+00> : vector<256x128xf32>
    %3 = tpu.matmul %1, %2, %cst {dimension_numbers = #tpu.dot_dimension_numbers<[1], [0], [0], [1], [0, 0, 1, 1], [], []>} : vector<256x128xbf16>, vector<128x128xbf16>, vector<256x128xf32> -> vector<256x128xf32>
    %c0_4 = arith.constant 0 : index
    %c0_5 = arith.constant 0 : index
    %4 = vector.load %arg4[%c0_4, %c0_5] : memref<1x128xf32, #tpu.memory_space<vmem>>, vector<1x128xf32>
    %5 = vector.broadcast %4 : vector<1x128xf32> to vector<256x128xf32>
    %6 = arith.addf %3, %5 : vector<256x128xf32>
    %cst_6 = arith.constant 0.000000e+00 : f32
    %7 = vector.broadcast %cst_6 : f32 to vector<256x128xf32>
    %8 = arith.cmpf oge, %6, %7 : vector<256x128xf32>
    %cst_7 = arith.constant 0.00999999977 : f32
    %9 = vector.broadcast %cst_7 : f32 to vector<256x128xf32>
    %10 = arith.mulf %9, %6 : vector<256x128xf32>
    %11 = arith.select %8, %6, %10 : vector<256x128xi1>, vector<256x128xf32>
    %12 = arith.truncf %11 : vector<256x128xf32> to vector<256x128xbf16>
    %c0_8 = arith.constant 0 : index
    %c0_9 = arith.constant 0 : index
    %c0_10 = arith.constant 0 : index
    %13 = vector.load %arg7[%c0_8, %c0_9, %c0_10] : memref<1x256x128xbf16, #tpu.memory_space<vmem>>, vector<1x256x128xbf16>
    %14 = vector.shape_cast %13 : vector<1x256x128xbf16> to vector<256x128xbf16>
    %15 = vector.shape_cast %12 : vector<256x128xbf16> to vector<1x256x128xbf16>
    tpu.vector_store %arg7[%c0_8, %c0_9, %c0_10], %15 {strides = array<i32>} : memref<1x256x128xbf16, #tpu.memory_space<vmem>>, vector<1x256x128xbf16>,
    %c0_11 = arith.constant 0 : index
    %c0_12 = arith.constant 0 : index
    %16 = vector.load %arg5[%c0_11, %c0_12] : memref<128x128xbf16, #tpu.memory_space<vmem>>, vector<128x128xbf16>
    %cst_13 = arith.constant dense<0.000000e+00> : vector<256x128xf32>
    %17 = tpu.matmul %1, %16, %cst_13 {dimension_numbers = #tpu.dot_dimension_numbers<[1], [0], [0], [1], [0, 0, 1, 1], [], []>} : vector<256x128xbf16>, vector<128x128xbf16>, vector<256x128xf32> -> vector<256x128xf32>
    %c0_14 = arith.constant 0 : index
    %c0_15 = arith.constant 0 : index
    %18 = vector.load %arg6[%c0_14, %c0_15] : memref<1x128xf32, #tpu.memory_space<vmem>>, vector<1x128xf32>
    %19 = vector.broadcast %18 : vector<1x128xf32> to vector<256x128xf32>
    %20 = arith.addf %17, %19 : vector<256x128xf32>
    %21 = arith.truncf %20 : vector<256x128xf32> to vector<256x128xbf16>
    %c0_16 = arith.constant 0 : index
    %c0_17 = arith.constant 0 : index
    %c0_18 = arith.constant 0 : index
    %22 = vector.load %arg8[%c0_16, %c0_17, %c0_18] : memref<1x256x128xbf16, #tpu.memory_space<vmem>>, vector<1x256x128xbf16>
    %23 = vector.shape_cast %22 : vector<1x256x128xbf16> to vector<256x128xbf16>
    %24 = vector.shape_cast %21 : vector<256x128xbf16> to vector<1x256x128xbf16>
    tpu.vector_store %arg8[%c0_16, %c0_17, %c0_18], %24 {strides = array<i32>} : memref<1x256x128xbf16, #tpu.memory_space<vmem>>, vector<1x256x128xbf16>,
    return
  }
  func.func @transform_0(%arg0: i32, %arg1: i32) -> (i32, i32, i32) {
    %c0_i32 = arith.constant 0 : i32
    %c0_i32_0 = arith.constant 0 : i32
    return %arg0, %arg1, %c0_i32 : i32, i32, i32
  }
  func.func @transform_1(%arg0: i32, %arg1: i32) -> (i32, i32) {
    %c0_i32 = arith.constant 0 : i32
    %c0_i32_0 = arith.constant 0 : i32
    %c0_i32_1 = arith.constant 0 : i32
    return %c0_i32, %c0_i32_0 : i32, i32
  }
  func.func @transform_2(%arg0: i32, %arg1: i32) -> (i32, i32) {
    %c0_i32 = arith.constant 0 : i32
    %c0_i32_0 = arith.constant 0 : i32
    %c0_i32_1 = arith.constant 0 : i32
    return %c0_i32, %c0_i32_0 : i32, i32
  }
  func.func @transform_3(%arg0: i32, %arg1: i32) -> (i32, i32) {
    %c0_i32 = arith.constant 0 : i32
    %c0_i32_0 = arith.constant 0 : i32
    %c0_i32_1 = arith.constant 0 : i32
    return %c0_i32, %c0_i32_0 : i32, i32
  }
  func.func @transform_4(%arg0: i32, %arg1: i32) -> (i32, i32) {
    %c0_i32 = arith.constant 0 : i32
    %c0_i32_0 = arith.constant 0 : i32
    %c0_i32_1 = arith.constant 0 : i32
    return %c0_i32, %c0_i32_0 : i32, i32
  }
  func.func @transform_5(%arg0: i32, %arg1: i32) -> (i32, i32, i32) {
    %c0_i32 = arith.constant 0 : i32
    %c0_i32_0 = arith.constant 0 : i32
    return %arg0, %arg1, %c0_i32 : i32, i32, i32
  }
  func.func @transform_6(%arg0: i32, %arg1: i32) -> (i32, i32, i32) {
    %c0_i32 = arith.constant 0 : i32
    %c0_i32_0 = arith.constant 0 : i32
    return %arg0, %arg1, %c0_i32 : i32, i32, i32
  }
}

</mosaic_0001>

<llo_original>
// kernel: tpu_custom_call.1
$region0: #{tpu_custom_call.1}
  #allocation0 [shape = 'u32[]', space=smem, size = 0x4, offset = 0x4, fixed_abs, tag = 'smem constant byte address 0x4 - core index']
  #allocation1 [shape = 'u32[72,128]{1,0:T(1,128)}', space=vmem, size = 0x9000, scoped, tag = 'internal scratch']
  %s0 = inlined_call_operand.hbm [shape: bf16[2,256,128], index: 0, kind: input, shape index: {}]
  %s1 = inlined_call_operand.hbm [shape: bf16[128,128], index: 1, kind: input, shape index: {}]
  %s2 = inlined_call_operand.vmem [shape: f32[1,128], index: 2, kind: input, shape index: {}]
  %s3 = inlined_call_operand.hbm [shape: bf16[128,128], index: 3, kind: input, shape index: {}]
  %s4 = inlined_call_operand.vmem [shape: f32[1,128], index: 4, kind: input, shape index: {}]
  %s5 = inlined_call_operand.hbm [shape: bf16[2,256,128], index: 5, kind: output, shape index: {0}]
  %s6 = inlined_call_operand.hbm [shape: bf16[2,256,128], index: 6, kind: output, shape index: {1}]
  %7 = xla_tuple %s5, %s6
  %s8 = sld [smem:[#allocation0]]
  $region73: #{tpu_custom_call.1} parent=0
    _
  %s10 = ssub.s32 1, %s8
  %s11 = scalar_select 0, %s10, %s8
  $region1: #{tpu_custom_call.1} parent=0
    #allocation2 [shape = 'u8[131072]{0}', space=vmem, size = 0x20000, scoped, tag = 'input window, operand 0']
    #allocation3 [shape = 's32[2]{0}', space=sflag, size = 0x8, scoped, tag = 'scoped memory for tpu_custom_call.1']
    #allocation4 [shape = 's32[2]{0}', space=sflag, size = 0x8, scoped, tag = 'scoped memory for tpu_custom_call.1']
    #allocation5 [shape = 'u8[32768]{0}', space=vmem, size = 0x8000, scoped, tag = 'input window, operand 1, single buffered']
    #allocation6 [shape = 's32[1]{0}', space=sflag, size = 0x4, scoped, tag = 'scoped memory for tpu_custom_call.1']
    #allocation7 [shape = 'u8[32768]{0}', space=vmem, size = 0x8000, scoped, tag = 'input window, operand 3, single buffered']
    #allocation8 [shape = 'u8[131072]{0}', space=vmem, size = 0x20000, scoped, tag = 'output window, operand 0']
    #allocation9 [shape = 'u8[131072]{0}', space=vmem, size = 0x20000, scoped, tag = 'output window, operand 1']
    #allocation10 [shape = 's32[2]{0}', space=sflag, size = 0x8, scoped, tag = 'scoped memory for tpu_custom_call.1']
    %12 = vsyncpa [#allocation3], 0
    %s13 = scalar_lea.sflag [#allocation3], 1
    %14 = vsyncpa %s13, 0
    %15 = vsyncpa [#allocation6], 0
    %16 = vsyncpa [#allocation4], 0
    %s17 = scalar_lea.sflag [#allocation4], 1
    %18 = vsyncpa %s17, 0
    %19 = vsyncpa [#allocation10], 0
    %s20 = scalar_lea.sflag [#allocation10], 1
    %21 = vsyncpa %s20, 0
    loop: start=0, step=1, limit=4
    $region2: #{tpu_custom_call.1} parent=1 // loop_pre_header
      _
    $region3: #{tpu_custom_call.1} parent=1 // loop_header
      %s23 = sphi 0, %s27
      %p24 = scmp.ge.s32.totalorder %s23, 4
      %s30 = sphi 0, %s42
      %s31 = sphi 0, %s38
      %s32 = sphi 0, %s30
      %s33 = sphi 0, %s31
      %s34 = sphi 0, %s32
      %s35 = sphi 0, %s33
      %s47 = sphi 0, %s49
      %s50 = sphi 0, %s47
      %s51 = sphi 0, %s50
      %s67 = sphi 0, %s51
      %s71 = sphi 0, %s71
      %s73 = sphi 0, %s71
      %s74 = sphi 0, %s73
      %s88 = sphi 0, %s74
      %s92 = sphi 0, %s92
      %s94 = sphi 0, %s92
      %s95 = sphi 0, %s94
      %s109 = sphi 0, %s95
      %s113 = sphi 0, %s113
      %s115 = sphi 0, %s113
      %s116 = sphi 0, %s115
      %s130 = sphi 0, %s116
      %s134 = sphi 0, %s134
      %s136 = sphi 0, %s134
      %s137 = sphi 0, %s136
      %s151 = sphi 0, %s137
      %s159 = sphi 0, %s161
      %s162 = sphi 0, %s159
      %s163 = sphi 0, %s162
      %s179 = sphi 0, %s163
      %s187 = sphi 0, %s189
      %s190 = sphi 0, %s187
      %s191 = sphi 0, %s190
      %s207 = sphi 0, %s191
    $region4: #{tpu_custom_call.1} parent=1 // loop_header_branch
      %26 = sbr.rel (%p24) target = $region8
    $region5: #{tpu_custom_call.1} parent=1 // loop_body
      %s28 = ssub.s32 %s23, 1
      %s29 = ssub.s32 %s23, 2
      %s36 = sadd.s32 1, %s31
      %p37 = scmp.ge.s32.totalorder %s36, 1
      %s38 = scalar_select %p37, 0, %s36
      %s39 = sadd.s32 1, %s30
      %s40 = scalar_select %p37, %s39, %s30
      %p41 = scmp.ge.s32.totalorder %s40, 2
      %s42 = scalar_select %p41, 0, %s40
      %s43 = ssub.s32 %s30, %s42
      %s44 = ssub.s32 %s31, %s38
      %s45 = sor.u32 %s43, %s44
      %p46 = scmp.eq.s32.totalorder %s45, 0
      %s48 = sadd.s32 %s47, 1
      %s49 = scalar_select %p46, %s47, %s48
      %p52 = pneg %p46
      %p53 = scmp.eq.s32.totalorder %s23, 1
      %p54 = por %p52, %p53
      %p55 = scmp.ne.s32.totalorder %s47, %s50
      %p56 = scmp.eq.s32.totalorder %s23, 0
      %p57 = por %p55, %p56
      %p58 = scmp.ne.s32.totalorder %s47, %s50
      %p59 = scmp.eq.s32.totalorder %s28, 1
      %p60 = por %p58, %p59
      %p61 = scmp.ne.s32.totalorder %s50, %s51
      %p62 = scmp.eq.s32.totalorder %s28, 0
      %p63 = por %p61, %p62
      %p64 = scmp.ne.s32.totalorder %s50, %s51
      %p65 = scmp.eq.s32.totalorder %s29, 1
      %p66 = por %p64, %p65
      %p68 = scmp.ne.s32.totalorder %s51, %s67
      %p69 = scmp.eq.s32.totalorder %s29, 0
      %p70 = por %p68, %p69
      %s72 = sadd.s32 %s71, 1
      %p75 = scmp.eq.s32.totalorder %s23, 1
      %p76 = scmp.ne.s32.totalorder %s71, %s73
      %p77 = scmp.eq.s32.totalorder %s23, 0
      %p78 = por %p76, %p77
      %p79 = scmp.ne.s32.totalorder %s71, %s73
      %p80 = scmp.eq.s32.totalorder %s28, 1
      %p81 = por %p79, %p80
      %p82 = scmp.ne.s32.totalorder %s73, %s74
      %p83 = scmp.eq.s32.totalorder %s28, 0
      %p84 = por %p82, %p83
      %p85 = scmp.ne.s32.totalorder %s73, %s74
      %p86 = scmp.eq.s32.totalorder %s29, 1
      %p87 = por %p85, %p86
      %p89 = scmp.ne.s32.totalorder %s74, %s88
      %p90 = scmp.eq.s32.totalorder %s29, 0
      %p91 = por %p89, %p90
      %s93 = sadd.s32 %s92, 1
      %p96 = scmp.eq.s32.totalorder %s23, 1
      %p97 = scmp.ne.s32.totalorder %s92, %s94
      %p98 = scmp.eq.s32.totalorder %s23, 0
      %p99 = por %p97, %p98
      %p100 = scmp.ne.s32.totalorder %s92, %s94
      %p101 = scmp.eq.s32.totalorder %s28, 1
      %p102 = por %p100, %p101
      %p103 = scmp.ne.s32.totalorder %s94, %s95
      %p104 = scmp.eq.s32.totalorder %s28, 0
      %p105 = por %p103, %p104
      %p106 = scmp.ne.s32.totalorder %s94, %s95
      %p107 = scmp.eq.s32.totalorder %s29, 1
      %p108 = por %p106, %p107
      %p110 = scmp.ne.s32.totalorder %s95, %s109
      %p111 = scmp.eq.s32.totalorder %s29, 0
      %p112 = por %p110, %p111
      %s114 = sadd.s32 %s113, 1
      %p117 = scmp.eq.s32.totalorder %s23, 1
      %p118 = scmp.ne.s32.totalorder %s113, %s115
      %p119 = scmp.eq.s32.totalorder %s23, 0
      %p120 = por %p118, %p119
      %p121 = scmp.ne.s32.totalorder %s113, %s115
      %p122 = scmp.eq.s32.totalorder %s28, 1
      %p123 = por %p121, %p122
      %p124 = scmp.ne.s32.totalorder %s115, %s116
      %p125 = scmp.eq.s32.totalorder %s28, 0
      %p126 = por %p124, %p125
      %p127 = scmp.ne.s32.totalorder %s115, %s116
      %p128 = scmp.eq.s32.totalorder %s29, 1
      %p129 = por %p127, %p128
      %p131 = scmp.ne.s32.totalorder %s116, %s130
      %p132 = scmp.eq.s32.totalorder %s29, 0
      %p133 = por %p131, %p132
      %s135 = sadd.s32 %s134, 1
      %p138 = scmp.eq.s32.totalorder %s23, 1
      %p139 = scmp.ne.s32.totalorder %s134, %s136
      %p140 = scmp.eq.s32.totalorder %s23, 0
      %p141 = por %p139, %p140
      %p142 = scmp.ne.s32.totalorder %s134, %s136
      %p143 = scmp.eq.s32.totalorder %s28, 1
      %p144 = por %p142, %p143
      %p145 = scmp.ne.s32.totalorder %s136, %s137
      %p146 = scmp.eq.s32.totalorder %s28, 0
      %p147 = por %p145, %p146
      %p148 = scmp.ne.s32.totalorder %s136, %s137
      %p149 = scmp.eq.s32.totalorder %s29, 1
      %p150 = por %p148, %p149
      %p152 = scmp.ne.s32.totalorder %s137, %s151
      %p153 = scmp.eq.s32.totalorder %s29, 0
      %p154 = por %p152, %p153
      %s155 = ssub.s32 %s30, %s42
      %s156 = ssub.s32 %s31, %s38
      %s157 = sor.u32 %s155, %s156
      %p158 = scmp.eq.s32.totalorder %s157, 0
      %s160 = sadd.s32 %s159, 1
      %s161 = scalar_select %p158, %s159, %s160
      %p164 = pneg %p158
      %p165 = scmp.eq.s32.totalorder %s23, 1
      %p166 = por %p164, %p165
      %p167 = scmp.ne.s32.totalorder %s159, %s162
      %p168 = scmp.eq.s32.totalorder %s23, 0
      %p169 = por %p167, %p168
      %p170 = scmp.ne.s32.totalorder %s159, %s162
      %p171 = scmp.eq.s32.totalorder %s28, 1
      %p172 = por %p170, %p171
      %p173 = scmp.ne.s32.totalorder %s162, %s163
      %p174 = scmp.eq.s32.totalorder %s28, 0
      %p175 = por %p173, %p174
      %p176 = scmp.ne.s32.totalorder %s162, %s163
      %p177 = scmp.eq.s32.totalorder %s29, 1
      %p178 = por %p176, %p177
      %p180 = scmp.ne.s32.totalorder %s163, %s179
      %p181 = scmp.eq.s32.totalorder %s29, 0
      %p182 = por %p180, %p181
      %s183 = ssub.s32 %s30, %s42
      %s184 = ssub.s32 %s31, %s38
      %s185 = sor.u32 %s183, %s184
      %p186 = scmp.eq.s32.totalorder %s185, 0
      %s188 = sadd.s32 %s187, 1
      %s189 = scalar_select %p186, %s187, %s188
      %p192 = pneg %p186
      %p193 = scmp.eq.s32.totalorder %s23, 1
      %p194 = por %p192, %p193
      %p195 = scmp.ne.s32.totalorder %s187, %s190
      %p196 = scmp.eq.s32.totalorder %s23, 0
      %p197 = por %p195, %p196
      %p198 = scmp.ne.s32.totalorder %s187, %s190
      %p199 = scmp.eq.s32.totalorder %s28, 1
      %p200 = por %p198, %p199
      %p201 = scmp.ne.s32.totalorder %s190, %s191
      %p202 = scmp.eq.s32.totalorder %s28, 0
      %p203 = por %p201, %p202
      %p204 = scmp.ne.s32.totalorder %s190, %s191
      %p205 = scmp.eq.s32.totalorder %s29, 1
      %p206 = por %p204, %p205
      %p208 = scmp.ne.s32.totalorder %s191, %s207
      %p209 = scmp.eq.s32.totalorder %s29, 0
      %p210 = por %p208, %p209
      %p211 = scmp.le.s32.totalorder 1, %s23
      %p212 = scmp.lt.s32.totalorder %s23, 3
      %p213 = pnand %p211, %p212
      %p214 = pneg %p213
      // Predicated region
      $region9: #{tpu_custom_call.1} parent=5 // pred_check
        _
      $region10: #{tpu_custom_call.1} parent=5 // pred_check_branch
        %216 = sbr.rel (%p213) target = $region12
      $region11: #{tpu_custom_call.1} parent=5 // pred_region
        %s217 = ssub.s32 %s23, 1
        // Predicated region
        $region13: #{tpu_custom_call.1} parent=11 // pred_check
          %p218 = pneg %p84
        $region14: #{tpu_custom_call.1} parent=11 // pred_check_branch
          %220 = sbr.rel (%p218) target = $region16
        $region15: #{tpu_custom_call.1} parent=11 // pred_region
          %222 = vsyncadd [#allocation6], 0
          %s223 = sshll.u32 %s1, 4
          %s224 = int_to_ptr.hbm [resolvable:$true] %s223
          %s225 = sshll.u32 [#allocation5], 4
          %s226 = int_to_ptr.vmem [resolvable:$true] %s225
          %231 = dma.hbm_to_vmem [thread:$0]  %s224, 1024, %s226, [#allocation6], 64, 64, 4
        $region16: #{tpu_custom_call.1} parent=11 // pred_fallthru
          _
        // Predicated region
        $region17: #{tpu_custom_call.1} parent=11 // pred_check
          %p232 = pneg %p105
        $region18: #{tpu_custom_call.1} parent=11 // pred_check_branch
          %234 = sbr.rel (%p232) target = $region20
        $region19: #{tpu_custom_call.1} parent=11 // pred_region
          _
        $region20: #{tpu_custom_call.1} parent=11 // pred_fallthru
          _
        // Predicated region
        $region21: #{tpu_custom_call.1} parent=11 // pred_check
          %p235 = pneg %p126
        $region22: #{tpu_custom_call.1} parent=11 // pred_check_branch
          %237 = sbr.rel (%p235) target = $region24
        $region23: #{tpu_custom_call.1} parent=11 // pred_region
          %239 = vsyncadd [#allocation6], 0
          %s240 = sshll.u32 %s3, 4
          %s241 = int_to_ptr.hbm [resolvable:$true] %s240
          %s242 = sshll.u32 [#allocation7], 4
          %s243 = int_to_ptr.vmem [resolvable:$true] %s242
          %248 = dma.hbm_to_vmem [thread:$0]  %s241, 1024, %s243, [#allocation6], 64, 64, 4
        $region24: #{tpu_custom_call.1} parent=11 // pred_fallthru
          _
        // Predicated region
        $region25: #{tpu_custom_call.1} parent=11 // pred_check
          %p249 = pneg %p147
        $region26: #{tpu_custom_call.1} parent=11 // pred_check_branch
          %251 = sbr.rel (%p249) target = $region28
        $region27: #{tpu_custom_call.1} parent=11 // pred_region
          _
        $region28: #{tpu_custom_call.1} parent=11 // pred_fallthru
          _
      $region12: #{tpu_custom_call.1} parent=5 // pred_fallthru
        _
      %p252 = scmp.lt.s32.totalorder %s23, 2
      // Predicated region
      $region29: #{tpu_custom_call.1} parent=5 // pred_check
        %p253 = pneg %p252
      $region30: #{tpu_custom_call.1} parent=5 // pred_check_branch
        %255 = sbr.rel (%p253) target = $region32
      $region31: #{tpu_custom_call.1} parent=5 // pred_region
        // Predicated region
        $region33: #{tpu_custom_call.1} parent=31 // pred_check
          %p256 = pneg %p57
        $region34: #{tpu_custom_call.1} parent=31 // pred_check_branch
          %258 = sbr.rel (%p256) target = $region36
        $region35: #{tpu_custom_call.1} parent=31 // pred_region
          %s259 = sand.u32 %s47, 1
          %s260 = scalar_lea.sflag [#allocation3], %s259
          %s261 = sand.u32 %s47, 1
          %s262 = smul.addr %s261, 128
          %s263 = scalar_lea.vmem [#allocation2], %s262
          %s264 = smul.u32 32, %s31
          %266 = vsyncadd %s260, 0
          %s267 = smul.addr %s30, 32
          %s268 = sadd.s32 %s264, %s267
          %s269 = smul.addr %s268, 4
          %s270 = scalar_lea.hbm %s0, %s269
          %s271 = sshll.u32 %s270, 4
          %s272 = int_to_ptr.hbm [resolvable:$true] %s271
          %s273 = sshll.u32 %s263, 4
          %s274 = int_to_ptr.vmem [resolvable:$true] %s273
          %279 = dma.hbm_to_vmem [thread:$0]  %s272, 2048, %s274, %s260, 64, 64, 4
        $region36: #{tpu_custom_call.1} parent=31 // pred_fallthru
          _
      $region32: #{tpu_custom_call.1} parent=5 // pred_fallthru
        _
      %p280 = scmp.le.s32.totalorder 1, %s23
      %p281 = scmp.lt.s32.totalorder %s23, 3
      %p282 = pnand %p280, %p281
      %p283 = pneg %p282
      // Predicated region
      $region37: #{tpu_custom_call.1} parent=5 // pred_check
        _
      $region38: #{tpu_custom_call.1} parent=5 // pred_check_branch
        %285 = sbr.rel (%p282) target = $region40
      $region39: #{tpu_custom_call.1} parent=5 // pred_region
        %s286 = ssub.s32 %s23, 1
        %s287 = sand.u32 %s50, 1
        %s288 = scalar_lea.sflag [#allocation3], %s287
        %s289 = sand.u32 %s50, 1
        %s290 = smul.addr %s289, 128
        %s291 = scalar_lea.vmem [#allocation2], %s290
        // Predicated region
        $region41: #{tpu_custom_call.1} parent=39 // pred_check
          %p292 = pneg %p63
        $region42: #{tpu_custom_call.1} parent=39 // pred_check_branch
          %294 = sbr.rel (%p292) target = $region44
        $region43: #{tpu_custom_call.1} parent=39 // pred_region
          %296 = dma.done %s288, 2048
        $region44: #{tpu_custom_call.1} parent=39 // pred_fallthru
          _
        // Predicated region
        $region45: #{tpu_custom_call.1} parent=39 // pred_check
          %p297 = pneg %p84
        $region46: #{tpu_custom_call.1} parent=39 // pred_check_branch
          %299 = sbr.rel (%p297) target = $region48
        $region47: #{tpu_custom_call.1} parent=39 // pred_region
          %301 = dma.done [#allocation6], 1024
        $region48: #{tpu_custom_call.1} parent=39 // pred_fallthru
          _
        // Predicated region
        $region49: #{tpu_custom_call.1} parent=39 // pred_check
          %p302 = pneg %p126
        $region50: #{tpu_custom_call.1} parent=39 // pred_check_branch
          %304 = sbr.rel (%p302) target = $region52
        $region51: #{tpu_custom_call.1} parent=39 // pred_region
          %306 = dma.done [#allocation6], 1024
        $region52: #{tpu_custom_call.1} parent=39 // pred_fallthru
          _
        %s307 = sand.u32 %s50, 1
        %s308 = scalar_lea.sflag [#allocation3], %s307
        %s309 = sand.u32 %s50, 1
        %s310 = smul.addr %s309, 128
        %s311 = scalar_lea.vmem [#allocation2], %s310
        %p312 = pneg %p63
        %p313 = pneg %p60
        %p314 = pneg %p84
        %p315 = pneg %p81
        %p316 = pneg %p105
        %p317 = pneg %p102
        %p318 = pneg %p126
        %p319 = pneg %p123
        %p320 = pneg %p147
        %p321 = pneg %p144
        %p322 = pneg %p175
        %p323 = pneg %p172
        %s324 = sand.u32 %s162, 1
        %s325 = scalar_lea.sflag [#allocation4], %s324
        %s326 = sand.u32 %s162, 1
        %s327 = smul.addr %s326, 128
        %s328 = scalar_lea.vmem [#allocation8], %s327
        %p329 = pneg %p203
        %p330 = pneg %p200
        %s331 = sand.u32 %s190, 1
        %s332 = scalar_lea.sflag [#allocation10], %s331
        %s333 = sand.u32 %s190, 1
        %s334 = smul.addr %s333, 128
        %s335 = scalar_lea.vmem [#allocation9], %s334
        %s336 = smul.u32 32, %s33
        %s337 = smul.u32 32, %s33
        %s338 = smul.u32 32, %s33
        %v339 = vld [vmem:[%s291] sm:$0xf]
        %v340 = vld [vmem:[%s291 + $0x4] sm:$0xf]
        %v341 = vld [vmem:[%s291 + $0x8] sm:$0xf]
        %v342 = vld [vmem:[%s291 + $0xc] sm:$0xf]
        %v343 = vld [vmem:[%s291 + $0x10] sm:$0xf]
        %v344 = vld [vmem:[%s291 + $0x14] sm:$0xf]
        %v345 = vld [vmem:[%s291 + $0x18] sm:$0xf]
        %v346 = vld [vmem:[%s291 + $0x1c] sm:$0xf]
        %v347 = vld [vmem:[%s291 + $0x20] sm:$0xf]
        %v348 = vld [vmem:[%s291 + $0x24] sm:$0xf]
        %v349 = vld [vmem:[%s291 + $0x28] sm:$0xf]
        %v350 = vld [vmem:[%s291 + $0x2c] sm:$0xf]
        %v351 = vld [vmem:[%s291 + $0x30] sm:$0xf]
        %v352 = vld [vmem:[%s291 + $0x34] sm:$0xf]
        %v353 = vld [vmem:[%s291 + $0x38] sm:$0xf]
        %v354 = vld [vmem:[%s291 + $0x3c] sm:$0xf]
        %v355 = vld [vmem:[%s291 + $0x40] sm:$0xf]
        %v356 = vld [vmem:[%s291 + $0x44] sm:$0xf]
        %v357 = vld [vmem:[%s291 + $0x48] sm:$0xf]
        %v358 = vld [vmem:[%s291 + $0x4c] sm:$0xf]
        %v359 = vld [vmem:[%s291 + $0x50] sm:$0xf]
        %v360 = vld [vmem:[%s291 + $0x54] sm:$0xf]
        %v361 = vld [vmem:[%s291 + $0x58] sm:$0xf]
        %v362 = vld [vmem:[%s291 + $0x5c] sm:$0xf]
        %v363 = vld [vmem:[%s291 + $0x60] sm:$0xf]
        %v364 = vld [vmem:[%s291 + $0x64] sm:$0xf]
        %v365 = vld [vmem:[%s291 + $0x68] sm:$0xf]
        %v366 = vld [vmem:[%s291 + $0x6c] sm:$0xf]
        %v367 = vld [vmem:[%s291 + $0x70] sm:$0xf]
        %v368 = vld [vmem:[%s291 + $0x74] sm:$0xf]
        %v369 = vld [vmem:[%s291 + $0x78] sm:$0xf]
        %v370 = vld [vmem:[%s291 + $0x7c] sm:$0xf]
        %v371 = vld [vmem:[#allocation5] sm:$0xf]
        %v372 = vld [vmem:[#allocation5 + $0x4] sm:$0xf]
        %v373 = vld [vmem:[#allocation5 + $0x8] sm:$0xf]
        %v374 = vld [vmem:[#allocation5 + $0xc] sm:$0xf]
        %v375 = vld [vmem:[#allocation5 + $0x10] sm:$0xf]
        %v376 = vld [vmem:[#allocation5 + $0x14] sm:$0xf]
        %v377 = vld [vmem:[#allocation5 + $0x18] sm:$0xf]
        %v378 = vld [vmem:[#allocation5 + $0x1c] sm:$0xf]
        %v379 = vld [vmem:[#allocation5 + $0x20] sm:$0xf]
        %v380 = vld [vmem:[#allocation5 + $0x24] sm:$0xf]
        %v381 = vld [vmem:[#allocation5 + $0x28] sm:$0xf]
        %v382 = vld [vmem:[#allocation5 + $0x2c] sm:$0xf]
        %v383 = vld [vmem:[#allocation5 + $0x30] sm:$0xf]
        %v384 = vld [vmem:[#allocation5 + $0x34] sm:$0xf]
        %v385 = vld [vmem:[#allocation5 + $0x38] sm:$0xf]
        %v386 = vld [vmem:[#allocation5 + $0x3c] sm:$0xf]
        %v387 = vld [vmem:[%s2] sm:$0x1]
        %v389 = vperm.slane %v387, 0
        %v423 = vunpack.c.l.b16 %v339
        %v424 = vunpack.c.l.b16 %v340
        %v425 = vunpack.c.l.b16 %v341
        %v426 = vunpack.c.l.b16 %v342
        %v427 = vunpack.c.l.b16 %v343
        %v428 = vunpack.c.l.b16 %v344
        %v429 = vunpack.c.l.b16 %v345
        %v430 = vunpack.c.l.b16 %v346
        %v431 = vunpack.c.l.b16 %v347
        %v432 = vunpack.c.l.b16 %v348
        %v433 = vunpack.c.l.b16 %v349
        %v434 = vunpack.c.l.b16 %v350
        %v435 = vunpack.c.l.b16 %v351
        %v436 = vunpack.c.l.b16 %v352
        %v437 = vunpack.c.l.b16 %v353
        %v438 = vunpack.c.l.b16 %v354
        %v439 = vunpack.c.l.b16 %v355
        %v440 = vunpack.c.l.b16 %v356
        %v441 = vunpack.c.l.b16 %v357
        %v442 = vunpack.c.l.b16 %v358
        %v443 = vunpack.c.l.b16 %v359
        %v444 = vunpack.c.l.b16 %v360
        %v445 = vunpack.c.l.b16 %v361
        %v446 = vunpack.c.l.b16 %v362
        %v447 = vunpack.c.l.b16 %v363
        %v448 = vunpack.c.l.b16 %v364
        %v449 = vunpack.c.l.b16 %v365
        %v450 = vunpack.c.l.b16 %v366
        %v451 = vunpack.c.l.b16 %v367
        %v452 = vunpack.c.l.b16 %v368
        %v453 = vunpack.c.l.b16 %v369
        %v454 = vunpack.c.l.b16 %v370
        %v455 = vpack.c.b16 %v424, %v423
        %v456 = vpack.c.b16 %v426, %v425
        %v457 = vpack.c.b16 %v428, %v427
        %v458 = vpack.c.b16 %v430, %v429
        %v459 = vpack.c.b16 %v432, %v431
        %v460 = vpack.c.b16 %v434, %v433
        %v461 = vpack.c.b16 %v436, %v435
        %v462 = vpack.c.b16 %v438, %v437
        %v463 = vpack.c.b16 %v440, %v439
        %v464 = vpack.c.b16 %v442, %v441
        %v465 = vpack.c.b16 %v444, %v443
        %v466 = vpack.c.b16 %v446, %v445
        %v467 = vpack.c.b16 %v448, %v447
        %v468 = vpack.c.b16 %v450, %v449
        %v469 = vpack.c.b16 %v452, %v451
        %v470 = vpack.c.b16 %v454, %v453
        %v503 = vunpack.c.l.b16 %v371
        %v504 = vunpack.c.l.b16 %v372
        %v505 = vunpack.c.l.b16 %v373
        %v506 = vunpack.c.l.b16 %v374
        %v507 = vunpack.c.l.b16 %v375
        %v508 = vunpack.c.l.b16 %v376
        %v509 = vunpack.c.l.b16 %v377
        %v510 = vunpack.c.l.b16 %v378
        %v511 = vunpack.c.l.b16 %v379
        %v512 = vunpack.c.l.b16 %v380
        %v513 = vunpack.c.l.b16 %v381
        %v514 = vunpack.c.l.b16 %v382
        %v515 = vunpack.c.l.b16 %v383
        %v516 = vunpack.c.l.b16 %v384
        %v517 = vunpack.c.l.b16 %v385
        %v518 = vunpack.c.l.b16 %v386
        %v519 = vpack.c.b16 %v504, %v503
        %v520 = vpack.c.b16 %v506, %v505
        %v521 = vpack.c.b16 %v508, %v507
        %v522 = vpack.c.b16 %v510, %v509
        %v523 = vpack.c.b16 %v512, %v511
        %v524 = vpack.c.b16 %v514, %v513
        %v525 = vpack.c.b16 %v516, %v515
        %v526 = vpack.c.b16 %v518, %v517
        %535 = vmatpush.bf16.msra.mxu0 %v526
        %536 = vmatpush.bf16.msra.mxu0 %v525
        %537 = vmatpush.bf16.msra.mxu0 %v524
        %538 = vmatpush.bf16.msra.mxu0 %v523
        %539 = vmatpush.bf16.msra.mxu0 %v522
        %540 = vmatpush.bf16.msra.mxu0 %v521
        %541 = vmatpush.bf16.msra.mxu0 %v520
        %542 = vmatpush.bf16.msra.mxu0 %v519
        %543 = vmatmul.bf16.gmra.mxu0 %v455
        %v544 = vpop.f32.mrf.mxu0
        %v545 = vadd.f32 %v389, %v544
        %v546 = vpop.f32.mrf.mxu0
        %v547 = vadd.f32 %v389, %v546
        %548 = vmatmul.bf16.gmra.mxu0 %v456
        %v549 = vpop.f32.mrf.mxu0
        %v550 = vadd.f32 %v389, %v549
        %v551 = vpop.f32.mrf.mxu0
        %v552 = vadd.f32 %v389, %v551
        %553 = vmatmul.bf16.gmra.mxu0 %v457
        %v554 = vpop.f32.mrf.mxu0
        %v555 = vadd.f32 %v389, %v554
        %v556 = vpop.f32.mrf.mxu0
        %v557 = vadd.f32 %v389, %v556
        %558 = vmatmul.bf16.gmra.mxu0 %v458
        %v559 = vpop.f32.mrf.mxu0
        %v560 = vadd.f32 %v389, %v559
        %v561 = vpop.f32.mrf.mxu0
        %v562 = vadd.f32 %v389, %v561
        %563 = vmatmul.bf16.gmra.mxu0 %v459
        %v564 = vpop.f32.mrf.mxu0
        %v565 = vadd.f32 %v389, %v564
        %v566 = vpop.f32.mrf.mxu0
        %v567 = vadd.f32 %v389, %v566
        %568 = vmatmul.bf16.gmra.mxu0 %v460
        %v569 = vpop.f32.mrf.mxu0
        %v570 = vadd.f32 %v389, %v569
        %v571 = vpop.f32.mrf.mxu0
        %v572 = vadd.f32 %v389, %v571
        %573 = vmatmul.bf16.gmra.mxu0 %v461
        %v574 = vpop.f32.mrf.mxu0
        %v575 = vadd.f32 %v389, %v574
        %v576 = vpop.f32.mrf.mxu0
        %v577 = vadd.f32 %v389, %v576
        %578 = vmatmul.bf16.gmra.mxu0 %v462
        %v579 = vpop.f32.mrf.mxu0
        %v580 = vadd.f32 %v389, %v579
        %v581 = vpop.f32.mrf.mxu0
        %v582 = vadd.f32 %v389, %v581
        %583 = vmatmul.bf16.gmra.mxu0 %v463
        %v584 = vpop.f32.mrf.mxu0
        %v585 = vadd.f32 %v389, %v584
        %v586 = vpop.f32.mrf.mxu0
        %v587 = vadd.f32 %v389, %v586
        %588 = vmatmul.bf16.gmra.mxu0 %v464
        %v589 = vpop.f32.mrf.mxu0
        %v590 = vadd.f32 %v389, %v589
        %v591 = vpop.f32.mrf.mxu0
        %v592 = vadd.f32 %v389, %v591
        %593 = vmatmul.bf16.gmra.mxu0 %v465
        %v594 = vpop.f32.mrf.mxu0
        %v595 = vadd.f32 %v389, %v594
        %v596 = vpop.f32.mrf.mxu0
        %v597 = vadd.f32 %v389, %v596
        %598 = vmatmul.bf16.gmra.mxu0 %v466
        %v599 = vpop.f32.mrf.mxu0
        %v600 = vadd.f32 %v389, %v599
        %v601 = vpop.f32.mrf.mxu0
        %v602 = vadd.f32 %v389, %v601
        %603 = vmatmul.bf16.gmra.mxu0 %v467
        %v604 = vpop.f32.mrf.mxu0
        %v605 = vadd.f32 %v389, %v604
        %v606 = vpop.f32.mrf.mxu0
        %v607 = vadd.f32 %v389, %v606
        %608 = vmatmul.bf16.gmra.mxu0 %v468
        %v609 = vpop.f32.mrf.mxu0
        %v610 = vadd.f32 %v389, %v609
        %v611 = vpop.f32.mrf.mxu0
        %v612 = vadd.f32 %v389, %v611
        %613 = vmatmul.bf16.gmra.mxu0 %v469
        %v614 = vpop.f32.mrf.mxu0
        %v615 = vadd.f32 %v389, %v614
        %v616 = vpop.f32.mrf.mxu0
        %v617 = vadd.f32 %v389, %v616
        %618 = vmatmul.bf16.gmra.mxu0 %v470
        %v619 = vpop.f32.mrf.mxu0
        %v620 = vadd.f32 %v389, %v619
        %v621 = vpop.f32.mrf.mxu0
        %v622 = vadd.f32 %v389, %v621
        %623 = vdwg.mxu0
        %vm624 = vcmp.ge.f32.partialorder %v545, 0.0
        %vm625 = vcmp.ge.f32.partialorder %v547, 0.0
        %vm626 = vcmp.ge.f32.partialorder %v550, 0.0
        %vm627 = vcmp.ge.f32.partialorder %v552, 0.0
        %vm628 = vcmp.ge.f32.partialorder %v555, 0.0
        %vm629 = vcmp.ge.f32.partialorder %v557, 0.0
        %vm630 = vcmp.ge.f32.partialorder %v560, 0.0
        %vm631 = vcmp.ge.f32.partialorder %v562, 0.0
        %vm632 = vcmp.ge.f32.partialorder %v565, 0.0
        %vm633 = vcmp.ge.f32.partialorder %v567, 0.0
        %vm634 = vcmp.ge.f32.partialorder %v570, 0.0
        %vm635 = vcmp.ge.f32.partialorder %v572, 0.0
        %vm636 = vcmp.ge.f32.partialorder %v575, 0.0
        %vm637 = vcmp.ge.f32.partialorder %v577, 0.0
        %vm638 = vcmp.ge.f32.partialorder %v580, 0.0
        %vm639 = vcmp.ge.f32.partialorder %v582, 0.0
        %vm640 = vcmp.ge.f32.partialorder %v585, 0.0
        %vm641 = vcmp.ge.f32.partialorder %v587, 0.0
        %vm642 = vcmp.ge.f32.partialorder %v590, 0.0
        %vm643 = vcmp.ge.f32.partialorder %v592, 0.0
        %vm644 = vcmp.ge.f32.partialorder %v595, 0.0
        %vm645 = vcmp.ge.f32.partialorder %v597, 0.0
        %vm646 = vcmp.ge.f32.partialorder %v600, 0.0
        %vm647 = vcmp.ge.f32.partialorder %v602, 0.0
        %vm648 = vcmp.ge.f32.partialorder %v605, 0.0
        %vm649 = vcmp.ge.f32.partialorder %v607, 0.0
        %vm650 = vcmp.ge.f32.partialorder %v610, 0.0
        %vm651 = vcmp.ge.f32.partialorder %v612, 0.0
        %vm652 = vcmp.ge.f32.partialorder %v615, 0.0
        %vm653 = vcmp.ge.f32.partialorder %v617, 0.0
        %vm654 = vcmp.ge.f32.partialorder %v620, 0.0
        %vm655 = vcmp.ge.f32.partialorder %v622, 0.0
        %v656 = vmul.f32 %v545, 0.01
        %v657 = vmul.f32 %v547, 0.01
        %v658 = vmul.f32 %v550, 0.01
        %v659 = vmul.f32 %v552, 0.01
        %v660 = vmul.f32 %v555, 0.01
        %v661 = vmul.f32 %v557, 0.01
        %v662 = vmul.f32 %v560, 0.01
        %v663 = vmul.f32 %v562, 0.01
        %v664 = vmul.f32 %v565, 0.01
        %v665 = vmul.f32 %v567, 0.01
        %v666 = vmul.f32 %v570, 0.01
        %v667 = vmul.f32 %v572, 0.01
        %v668 = vmul.f32 %v575, 0.01
        %v669 = vmul.f32 %v577, 0.01
        %v670 = vmul.f32 %v580, 0.01
        %v671 = vmul.f32 %v582, 0.01
        %v672 = vmul.f32 %v585, 0.01
        %v673 = vmul.f32 %v587, 0.01
        %v674 = vmul.f32 %v590, 0.01
        %v675 = vmul.f32 %v592, 0.01
        %v676 = vmul.f32 %v595, 0.01
        %v677 = vmul.f32 %v597, 0.01
        %v678 = vmul.f32 %v600, 0.01
        %v679 = vmul.f32 %v602, 0.01
        %v680 = vmul.f32 %v605, 0.01
        %v681 = vmul.f32 %v607, 0.01
        %v682 = vmul.f32 %v610, 0.01
        %v683 = vmul.f32 %v612, 0.01
        %v684 = vmul.f32 %v615, 0.01
        %v685 = vmul.f32 %v617, 0.01
        %v686 = vmul.f32 %v620, 0.01
        %v687 = vmul.f32 %v622, 0.01
        %v688 = vsel %vm624, %v545, %v656
        %v689 = vsel %vm625, %v547, %v657
        %v690 = vsel %vm626, %v550, %v658
        %v691 = vsel %vm627, %v552, %v659
        %v692 = vsel %vm628, %v555, %v660
        %v693 = vsel %vm629, %v557, %v661
        %v694 = vsel %vm630, %v560, %v662
        %v695 = vsel %vm631, %v562, %v663
        %v696 = vsel %vm632, %v565, %v664
        %v697 = vsel %vm633, %v567, %v665
        %v698 = vsel %vm634, %v570, %v666
        %v699 = vsel %vm635, %v572, %v667
        %v700 = vsel %vm636, %v575, %v668
        %v701 = vsel %vm637, %v577, %v669
        %v702 = vsel %vm638, %v580, %v670
        %v703 = vsel %vm639, %v582, %v671
        %v704 = vsel %vm640, %v585, %v672
        %v705 = vsel %vm641, %v587, %v673
        %v706 = vsel %vm642, %v590, %v674
        %v707 = vsel %vm643, %v592, %v675
        %v708 = vsel %vm644, %v595, %v676
        %v709 = vsel %vm645, %v597, %v677
        %v710 = vsel %vm646, %v600, %v678
        %v711 = vsel %vm647, %v602, %v679
        %v712 = vsel %vm648, %v605, %v680
        %v713 = vsel %vm649, %v607, %v681
        %v714 = vsel %vm650, %v610, %v682
        %v715 = vsel %vm651, %v612, %v683
        %v716 = vsel %vm652, %v615, %v684
        %v717 = vsel %vm653, %v617, %v685
        %v718 = vsel %vm654, %v620, %v686
        %v719 = vsel %vm655, %v622, %v687
        %v720 = vpack.c.bf16 %v688, %v688
        %v721 = vpack.c.bf16 %v689, %v689
        %v722 = vpack.c.bf16 %v690, %v690
        %v723 = vpack.c.bf16 %v691, %v691
        %v724 = vpack.c.bf16 %v692, %v692
        %v725 = vpack.c.bf16 %v693, %v693
        %v726 = vpack.c.bf16 %v694, %v694
        %v727 = vpack.c.bf16 %v695, %v695
        %v728 = vpack.c.bf16 %v696, %v696
        %v729 = vpack.c.bf16 %v697, %v697
        %v730 = vpack.c.bf16 %v698, %v698
        %v731 = vpack.c.bf16 %v699, %v699
        %v732 = vpack.c.bf16 %v700, %v700
        %v733 = vpack.c.bf16 %v701, %v701
        %v734 = vpack.c.bf16 %v702, %v702
        %v735 = vpack.c.bf16 %v703, %v703
        %v736 = vpack.c.bf16 %v704, %v704
        %v737 = vpack.c.bf16 %v705, %v705
        %v738 = vpack.c.bf16 %v706, %v706
        %v739 = vpack.c.bf16 %v707, %v707
        %v740 = vpack.c.bf16 %v708, %v708
        %v741 = vpack.c.bf16 %v709, %v709
        %v742 = vpack.c.bf16 %v710, %v710
        %v743 = vpack.c.bf16 %v711, %v711
        %v744 = vpack.c.bf16 %v712, %v712
        %v745 = vpack.c.bf16 %v713, %v713
        %v746 = vpack.c.bf16 %v714, %v714
        %v747 = vpack.c.bf16 %v715, %v715
        %v748 = vpack.c.bf16 %v716, %v716
        %v749 = vpack.c.bf16 %v717, %v717
        %v750 = vpack.c.bf16 %v718, %v718
        %v751 = vpack.c.bf16 %v719, %v719
        %752 = vst [vmem:[%s328] sm:$0xf] %v720
        %753 = vst [vmem:[%s328 + $0x4] sm:$0xf] %v721
        %754 = vst [vmem:[%s328 + $0x8] sm:$0xf] %v722
        %755 = vst [vmem:[%s328 + $0xc] sm:$0xf] %v723
        %756 = vst [vmem:[%s328 + $0x10] sm:$0xf] %v724
        %757 = vst [vmem:[%s328 + $0x14] sm:$0xf] %v725
        %758 = vst [vmem:[%s328 + $0x18] sm:$0xf] %v726
        %759 = vst [vmem:[%s328 + $0x1c] sm:$0xf] %v727
        %760 = vst [vmem:[%s328 + $0x20] sm:$0xf] %v728
        %761 = vst [vmem:[%s328 + $0x24] sm:$0xf] %v729
        %762 = vst [vmem:[%s328 + $0x28] sm:$0xf] %v730
        %763 = vst [vmem:[%s328 + $0x2c] sm:$0xf] %v731
        %764 = vst [vmem:[%s328 + $0x30] sm:$0xf] %v732
        %765 = vst [vmem:[%s328 + $0x34] sm:$0xf] %v733
        %766 = vst [vmem:[%s328 + $0x38] sm:$0xf] %v734
        %767 = vst [vmem:[%s328 + $0x3c] sm:$0xf] %v735
        %768 = vst [vmem:[%s328 + $0x40] sm:$0xf] %v736
        %769 = vst [vmem:[%s328 + $0x44] sm:$0xf] %v737
        %770 = vst [vmem:[%s328 + $0x48] sm:$0xf] %v738
        %771 = vst [vmem:[%s328 + $0x4c] sm:$0xf] %v739
        %772 = vst [vmem:[%s328 + $0x50] sm:$0xf] %v740
        %773 = vst [vmem:[%s328 + $0x54] sm:$0xf] %v741
        %774 = vst [vmem:[%s328 + $0x58] sm:$0xf] %v742
        %775 = vst [vmem:[%s328 + $0x5c] sm:$0xf] %v743
        %776 = vst [vmem:[%s328 + $0x60] sm:$0xf] %v744
        %777 = vst [vmem:[%s328 + $0x64] sm:$0xf] %v745
        %778 = vst [vmem:[%s328 + $0x68] sm:$0xf] %v746
        %779 = vst [vmem:[%s328 + $0x6c] sm:$0xf] %v747
        %780 = vst [vmem:[%s328 + $0x70] sm:$0xf] %v748
        %781 = vst [vmem:[%s328 + $0x74] sm:$0xf] %v749
        %782 = vst [vmem:[%s328 + $0x78] sm:$0xf] %v750
        %783 = vst [vmem:[%s328 + $0x7c] sm:$0xf] %v751
        %v784 = vld [vmem:[#allocation7] sm:$0xf]
        %v785 = vld [vmem:[#allocation7 + $0x4] sm:$0xf]
        %v786 = vld [vmem:[#allocation7 + $0x8] sm:$0xf]
        %v787 = vld [vmem:[#allocation7 + $0xc] sm:$0xf]
        %v788 = vld [vmem:[#allocation7 + $0x10] sm:$0xf]
        %v789 = vld [vmem:[#allocation7 + $0x14] sm:$0xf]
        %v790 = vld [vmem:[#allocation7 + $0x18] sm:$0xf]
        %v791 = vld [vmem:[#allocation7 + $0x1c] sm:$0xf]
        %v792 = vld [vmem:[#allocation7 + $0x20] sm:$0xf]
        %v793 = vld [vmem:[#allocation7 + $0x24] sm:$0xf]
        %v794 = vld [vmem:[#allocation7 + $0x28] sm:$0xf]
        %v795 = vld [vmem:[#allocation7 + $0x2c] sm:$0xf]
        %v796 = vld [vmem:[#allocation7 + $0x30] sm:$0xf]
        %v797 = vld [vmem:[#allocation7 + $0x34] sm:$0xf]
        %v798 = vld [vmem:[#allocation7 + $0x38] sm:$0xf]
        %v799 = vld [vmem:[#allocation7 + $0x3c] sm:$0xf]
        %v800 = vld [vmem:[%s4] sm:$0x1]
        %v802 = vperm.slane %v800, 0
        %v820 = vunpack.c.l.b16 %v784
        %v821 = vunpack.c.l.b16 %v785
        %v822 = vunpack.c.l.b16 %v786
        %v823 = vunpack.c.l.b16 %v787
        %v824 = vunpack.c.l.b16 %v788
        %v825 = vunpack.c.l.b16 %v789
        %v826 = vunpack.c.l.b16 %v790
        %v827 = vunpack.c.l.b16 %v791
        %v828 = vunpack.c.l.b16 %v792
        %v829 = vunpack.c.l.b16 %v793
        %v830 = vunpack.c.l.b16 %v794
        %v831 = vunpack.c.l.b16 %v795
        %v832 = vunpack.c.l.b16 %v796
        %v833 = vunpack.c.l.b16 %v797
        %v834 = vunpack.c.l.b16 %v798
        %v835 = vunpack.c.l.b16 %v799
        %v836 = vpack.c.b16 %v821, %v820
        %v837 = vpack.c.b16 %v823, %v822
        %v838 = vpack.c.b16 %v825, %v824
        %v839 = vpack.c.b16 %v827, %v826
        %v840 = vpack.c.b16 %v829, %v828
        %v841 = vpack.c.b16 %v831, %v830
        %v842 = vpack.c.b16 %v833, %v832
        %v843 = vpack.c.b16 %v835, %v834
        %852 = vmatpush.bf16.msra.mxu0 %v843
        %853 = vmatpush.bf16.msra.mxu0 %v842
        %854 = vmatpush.bf16.msra.mxu0 %v841
        %855 = vmatpush.bf16.msra.mxu0 %v840
        %856 = vmatpush.bf16.msra.mxu0 %v839
        %857 = vmatpush.bf16.msra.mxu0 %v838
        %858 = vmatpush.bf16.msra.mxu0 %v837
        %859 = vmatpush.bf16.msra.mxu0 %v836
        %860 = vmatmul.bf16.gmra.mxu0 %v455
        %v861 = vpop.f32.mrf.mxu0
        %v862 = vadd.f32 %v802, %v861
        %v863 = vpop.f32.mrf.mxu0
        %v864 = vadd.f32 %v802, %v863
        %865 = vmatmul.bf16.gmra.mxu0 %v456
        %v866 = vpop.f32.mrf.mxu0
        %v867 = vadd.f32 %v802, %v866
        %v868 = vpop.f32.mrf.mxu0
        %v869 = vadd.f32 %v802, %v868
        %870 = vmatmul.bf16.gmra.mxu0 %v457
        %v871 = vpop.f32.mrf.mxu0
        %v872 = vadd.f32 %v802, %v871
        %v873 = vpop.f32.mrf.mxu0
        %v874 = vadd.f32 %v802, %v873
        %875 = vmatmul.bf16.gmra.mxu0 %v458
        %v876 = vpop.f32.mrf.mxu0
        %v877 = vadd.f32 %v802, %v876
        %v878 = vpop.f32.mrf.mxu0
        %v879 = vadd.f32 %v802, %v878
        %880 = vmatmul.bf16.gmra.mxu0 %v459
        %v881 = vpop.f32.mrf.mxu0
        %v882 = vadd.f32 %v802, %v881
        %v883 = vpop.f32.mrf.mxu0
        %v884 = vadd.f32 %v802, %v883
        %885 = vmatmul.bf16.gmra.mxu0 %v460
        %v886 = vpop.f32.mrf.mxu0
        %v887 = vadd.f32 %v802, %v886
        %v888 = vpop.f32.mrf.mxu0
        %v889 = vadd.f32 %v802, %v888
        %890 = vmatmul.bf16.gmra.mxu0 %v461
        %v891 = vpop.f32.mrf.mxu0
        %v892 = vadd.f32 %v802, %v891
        %v893 = vpop.f32.mrf.mxu0
        %v894 = vadd.f32 %v802, %v893
        %895 = vmatmul.bf16.gmra.mxu0 %v462
        %v896 = vpop.f32.mrf.mxu0
        %v897 = vadd.f32 %v802, %v896
        %v898 = vpop.f32.mrf.mxu0
        %v899 = vadd.f32 %v802, %v898
        %900 = vmatmul.bf16.gmra.mxu0 %v463
        %v901 = vpop.f32.mrf.mxu0
        %v902 = vadd.f32 %v802, %v901
        %v903 = vpop.f32.mrf.mxu0
        %v904 = vadd.f32 %v802, %v903
        %905 = vmatmul.bf16.gmra.mxu0 %v464
        %v906 = vpop.f32.mrf.mxu0
        %v907 = vadd.f32 %v802, %v906
        %v908 = vpop.f32.mrf.mxu0
        %v909 = vadd.f32 %v802, %v908
        %910 = vmatmul.bf16.gmra.mxu0 %v465
        %v911 = vpop.f32.mrf.mxu0
        %v912 = vadd.f32 %v802, %v911
        %v913 = vpop.f32.mrf.mxu0
        %v914 = vadd.f32 %v802, %v913
        %915 = vmatmul.bf16.gmra.mxu0 %v466
        %v916 = vpop.f32.mrf.mxu0
        %v917 = vadd.f32 %v802, %v916
        %v918 = vpop.f32.mrf.mxu0
        %v919 = vadd.f32 %v802, %v918
        %920 = vmatmul.bf16.gmra.mxu0 %v467
        %v921 = vpop.f32.mrf.mxu0
        %v922 = vadd.f32 %v802, %v921
        %v923 = vpop.f32.mrf.mxu0
        %v924 = vadd.f32 %v802, %v923
        %925 = vmatmul.bf16.gmra.mxu0 %v468
        %v926 = vpop.f32.mrf.mxu0
        %v927 = vadd.f32 %v802, %v926
        %v928 = vpop.f32.mrf.mxu0
        %v929 = vadd.f32 %v802, %v928
        %930 = vmatmul.bf16.gmra.mxu0 %v469
        %v931 = vpop.f32.mrf.mxu0
        %v932 = vadd.f32 %v802, %v931
        %v933 = vpop.f32.mrf.mxu0
        %v934 = vadd.f32 %v802, %v933
        %935 = vmatmul.bf16.gmra.mxu0 %v470
        %v936 = vpop.f32.mrf.mxu0
        %v937 = vadd.f32 %v802, %v936
        %v938 = vpop.f32.mrf.mxu0
        %v939 = vadd.f32 %v802, %v938
        %940 = vdwg.mxu0
        %v941 = vpack.c.bf16 %v862, %v862
        %v942 = vpack.c.bf16 %v864, %v864
        %v943 = vpack.c.bf16 %v867, %v867
        %v944 = vpack.c.bf16 %v869, %v869
        %v945 = vpack.c.bf16 %v872, %v872
        %v946 = vpack.c.bf16 %v874, %v874
        %v947 = vpack.c.bf16 %v877, %v877
        %v948 = vpack.c.bf16 %v879, %v879
        %v949 = vpack.c.bf16 %v882, %v882
        %v950 = vpack.c.bf16 %v884, %v884
        %v951 = vpack.c.bf16 %v887, %v887
        %v952 = vpack.c.bf16 %v889, %v889
        %v953 = vpack.c.bf16 %v892, %v892
        %v954 = vpack.c.bf16 %v894, %v894
        %v955 = vpack.c.bf16 %v897, %v897
        %v956 = vpack.c.bf16 %v899, %v899
        %v957 = vpack.c.bf16 %v902, %v902
        %v958 = vpack.c.bf16 %v904, %v904
        %v959 = vpack.c.bf16 %v907, %v907
        %v960 = vpack.c.bf16 %v909, %v909
        %v961 = vpack.c.bf16 %v912, %v912
        %v962 = vpack.c.bf16 %v914, %v914
        %v963 = vpack.c.bf16 %v917, %v917
        %v964 = vpack.c.bf16 %v919, %v919
        %v965 = vpack.c.bf16 %v922, %v922
        %v966 = vpack.c.bf16 %v924, %v924
        %v967 = vpack.c.bf16 %v927, %v927
        %v968 = vpack.c.bf16 %v929, %v929
        %v969 = vpack.c.bf16 %v932, %v932
        %v970 = vpack.c.bf16 %v934, %v934
        %v971 = vpack.c.bf16 %v937, %v937
        %v972 = vpack.c.bf16 %v939, %v939
        %973 = vst [vmem:[%s335] sm:$0xf] %v941
        %974 = vst [vmem:[%s335 + $0x4] sm:$0xf] %v942
        %975 = vst [vmem:[%s335 + $0x8] sm:$0xf] %v943
        %976 = vst [vmem:[%s335 + $0xc] sm:$0xf] %v944
        %977 = vst [vmem:[%s335 + $0x10] sm:$0xf] %v945
        %978 = vst [vmem:[%s335 + $0x14] sm:$0xf] %v946
        %979 = vst [vmem:[%s335 + $0x18] sm:$0xf] %v947
        %980 = vst [vmem:[%s335 + $0x1c] sm:$0xf] %v948
        %981 = vst [vmem:[%s335 + $0x20] sm:$0xf] %v949
        %982 = vst [vmem:[%s335 + $0x24] sm:$0xf] %v950
        %983 = vst [vmem:[%s335 + $0x28] sm:$0xf] %v951
        %984 = vst [vmem:[%s335 + $0x2c] sm:$0xf] %v952
        %985 = vst [vmem:[%s335 + $0x30] sm:$0xf] %v953
        %986 = vst [vmem:[%s335 + $0x34] sm:$0xf] %v954
        %987 = vst [vmem:[%s335 + $0x38] sm:$0xf] %v955
        %988 = vst [vmem:[%s335 + $0x3c] sm:$0xf] %v956
        %989 = vst [vmem:[%s335 + $0x40] sm:$0xf] %v957
        %990 = vst [vmem:[%s335 + $0x44] sm:$0xf] %v958
        %991 = vst [vmem:[%s335 + $0x48] sm:$0xf] %v959
        %992 = vst [vmem:[%s335 + $0x4c] sm:$0xf] %v960
        %993 = vst [vmem:[%s335 + $0x50] sm:$0xf] %v961
        %994 = vst [vmem:[%s335 + $0x54] sm:$0xf] %v962
        %995 = vst [vmem:[%s335 + $0x58] sm:$0xf] %v963
        %996 = vst [vmem:[%s335 + $0x5c] sm:$0xf] %v964
        %997 = vst [vmem:[%s335 + $0x60] sm:$0xf] %v965
        %998 = vst [vmem:[%s335 + $0x64] sm:$0xf] %v966
        %999 = vst [vmem:[%s335 + $0x68] sm:$0xf] %v967
        %1000 = vst [vmem:[%s335 + $0x6c] sm:$0xf] %v968
        %1001 = vst [vmem:[%s335 + $0x70] sm:$0xf] %v969
        %1002 = vst [vmem:[%s335 + $0x74] sm:$0xf] %v970
        %1003 = vst [vmem:[%s335 + $0x78] sm:$0xf] %v971
        %1004 = vst [vmem:[%s335 + $0x7c] sm:$0xf] %v972
        %s1005 = sand.u32 %s162, 1
        %s1006 = scalar_lea.sflag [#allocation4], %s1005
        %s1007 = sand.u32 %s162, 1
        %s1008 = smul.addr %s1007, 128
        %s1009 = scalar_lea.vmem [#allocation8], %s1008
        %s1010 = sand.u32 %s190, 1
        %s1011 = scalar_lea.sflag [#allocation10], %s1010
        %s1012 = sand.u32 %s190, 1
        %s1013 = smul.addr %s1012, 128
        %s1014 = scalar_lea.vmem [#allocation9], %s1013
        // Predicated region
        $region53: #{tpu_custom_call.1} parent=39 // pred_check
          %p1015 = pneg %p172
        $region54: #{tpu_custom_call.1} parent=39 // pred_check_branch
          %1017 = sbr.rel (%p1015) target = $region56
        $region55: #{tpu_custom_call.1} parent=39 // pred_region
          %s1018 = smul.u32 32, %s33
          %1020 = vsyncadd %s1006, 0
          %s1021 = smul.addr %s32, 32
          %s1022 = sadd.s32 %s1018, %s1021
          %s1023 = smul.addr %s1022, 4
          %s1024 = scalar_lea.hbm %s5, %s1023
          %s1025 = sshll.u32 %s1009, 4
          %s1026 = int_to_ptr.vmem [resolvable:$true] %s1025
          %s1027 = sshll.u32 %s1024, 4
          %s1028 = int_to_ptr.hbm [resolvable:$true] %s1027
          %1033 = dma.vmem_to_hbm [thread:$0]  %s1026, 2048, %s1028, %s1006, 64, 64, 4
        $region56: #{tpu_custom_call.1} parent=39 // pred_fallthru
          _
        // Predicated region
        $region57: #{tpu_custom_call.1} parent=39 // pred_check
          %p1034 = pneg %p200
        $region58: #{tpu_custom_call.1} parent=39 // pred_check_branch
          %1036 = sbr.rel (%p1034) target = $region60
        $region59: #{tpu_custom_call.1} parent=39 // pred_region
          %s1037 = smul.u32 32, %s33
          %1039 = vsyncadd %s1011, 0
          %s1040 = smul.addr %s32, 32
          %s1041 = sadd.s32 %s1037, %s1040
          %s1042 = smul.addr %s1041, 4
          %s1043 = scalar_lea.hbm %s6, %s1042
          %s1044 = sshll.u32 %s1014, 4
          %s1045 = int_to_ptr.vmem [resolvable:$true] %s1044
          %s1046 = sshll.u32 %s1043, 4
          %s1047 = int_to_ptr.hbm [resolvable:$true] %s1046
          %1052 = dma.vmem_to_hbm [thread:$0]  %s1045, 2048, %s1047, %s1011, 64, 64, 4
        $region60: #{tpu_custom_call.1} parent=39 // pred_fallthru
          _
      $region40: #{tpu_custom_call.1} parent=5 // pred_fallthru
        _
      %p1053 = scmp.le.s32.totalorder 2, %s23
      // Predicated region
      $region61: #{tpu_custom_call.1} parent=5 // pred_check
        %p1054 = pneg %p1053
      $region62: #{tpu_custom_call.1} parent=5 // pred_check_branch
        %1056 = sbr.rel (%p1054) target = $region64
      $region63: #{tpu_custom_call.1} parent=5 // pred_region
        %s1057 = ssub.s32 %s23, 2
        // Predicated region
        $region65: #{tpu_custom_call.1} parent=63 // pred_check
          %p1058 = pneg %p178
        $region66: #{tpu_custom_call.1} parent=63 // pred_check_branch
          %1060 = sbr.rel (%p1058) target = $region68
        $region67: #{tpu_custom_call.1} parent=63 // pred_region
          %s1061 = sand.u32 %s163, 1
          %s1062 = scalar_lea.sflag [#allocation4], %s1061
          %s1063 = sand.u32 %s163, 1
          %s1064 = smul.addr %s1063, 128
          %s1065 = scalar_lea.vmem [#allocation8], %s1064
          %1067 = dma.done %s1062, 2048
        $region68: #{tpu_custom_call.1} parent=63 // pred_fallthru
          _
        // Predicated region
        $region69: #{tpu_custom_call.1} parent=63 // pred_check
          %p1068 = pneg %p206
        $region70: #{tpu_custom_call.1} parent=63 // pred_check_branch
          %1070 = sbr.rel (%p1068) target = $region72
        $region71: #{tpu_custom_call.1} parent=63 // pred_region
          %s1071 = sand.u32 %s191, 1
          %s1072 = scalar_lea.sflag [#allocation10], %s1071
          %s1073 = sand.u32 %s191, 1
          %s1074 = smul.addr %s1073, 128
          %s1075 = scalar_lea.vmem [#allocation9], %s1074
          %1077 = dma.done %s1072, 2048
        $region72: #{tpu_custom_call.1} parent=63 // pred_fallthru
          _
      $region64: #{tpu_custom_call.1} parent=5 // pred_fallthru
        _
    $region6: #{tpu_custom_call.1} parent=1 // loop_footer
      %s27 = sadd.s32 1, %s23
    $region7: #{tpu_custom_call.1} parent=1 // loop_footer_branch
      %22 = sbr.rel target = $region3
    $region8: #{tpu_custom_call.1} parent=1 // loop_exit
      _
    %1078 = vsyncpa [#allocation3], 1
    %s1079 = scalar_lea.sflag [#allocation3], 1
    %1080 = vsyncpa %s1079, 1
    %1081 = vsyncpa [#allocation6], 1
    %1082 = vsyncpa [#allocation4], 1
    %s1083 = scalar_lea.sflag [#allocation4], 1
    %1084 = vsyncpa %s1083, 1
    %1085 = vsyncpa [#allocation10], 1
    %s1086 = scalar_lea.sflag [#allocation10], 1
    %1087 = vsyncpa %s1086, 1

</llo_original>
